<compile_context>
chip_gen: v5e
topology: v5e:2x2
jax: 0.10.0
libtpu: 0.0.40
codegen_flags: <defaults>
</compile_context>

<pallas_src>
import functools

import jax
import jax.numpy as jnp
from jax.experimental import pallas as pl
from jax.experimental.pallas import tpu as pltpu

# D-slab tile size knob (largest slab that comfortably fits VMEM per step).
TD_MAX = 8
_VMEM_LIMIT = 48 * 1024 * 1024  # <= v7x 64 MiB physical VMEM per TensorCore


def _params(rank):
    return pltpu.CompilerParams(
        dimension_semantics=("parallel",) * rank,
        vmem_limit_bytes=_VMEM_LIMIT)


def _dtile(D):
    td = min(D, TD_MAX)
    assert D % td == 0, (D, td)
    return td, D // td


# ----------------------------------------------------------------------------
# Pallas kernels
# ----------------------------------------------------------------------------
def _conv3x3_kernel(xp_hbm, w_ref, o_ref, s_ref, xbuf, sem,
                    *, TD, H, W, Cin, Cout):
    """3x3x3 'same' conv on one (batch, D-slab) tile.

    xp_hbm : (N, D+2, H+2, W+2, Cin) bf16 in HBM (memory_space=pl.ANY)
    w_ref  : (3, 9*Cin, Cout) bf16 -- per-kd group, rows ordered (kh, kw, cin)
    o_ref  : (1, TD, H, W, Cout) bf16 raw conv output (bias omitted: it is
             cancelled by the following InstanceNorm's mean subtraction)
    s_ref  : (1, 1, 2, Cout) f32 per-slab [sum, sum-of-squares] over positions
    xbuf   : VMEM (TD+2, H+2, W+2, Cin) bf16 scratch for the haloed input slab
    """
    n = pl.program_id(0)
    dt = pl.program_id(1)
    # Manual halo DMA: padded rows [dt*TD, dt*TD + TD + 2) of sample n.
    cp = pltpu.make_async_copy(
        xp_hbm.at[n, pl.ds(dt * TD, TD + 2)], xbuf, sem.at[0])
    cp.start()
    cp.wait()

    x = xbuf[...]                                    # (TD+2, H+2, W+2, Cin)
    rows = TD * H * W
    acc = jnp.zeros((rows, Cout), jnp.float32)
    # im2col grouped by kd: 3 MXU matmuls with contraction 9*Cin.
    for kd in range(3):
        taps = []
        for kh in range(3):
            for kw in range(3):
                taps.append(
                    x[kd:kd + TD, kh:kh + H, kw:kw + W, :].reshape(rows, Cin))
        lhs = jnp.concatenate(taps, axis=-1)         # (rows, 9*Cin) bf16
        acc = acc + jnp.dot(lhs, w_ref[kd],
                            preferred_element_type=jnp.float32)
    o_ref[0] = acc.reshape(TD, H, W, Cout).astype(o_ref.dtype)
    su = jnp.sum(acc, axis=0, keepdims=True)         # (1, Cout)
    sq = jnp.sum(acc * acc, axis=0, keepdims=True)   # (1, Cout)
    s_ref[0, 0] = jnp.concatenate([su, sq], axis=0)


def _norm_act_kernel(raw_ref, m_ref, r_ref, e_ref, *out_refs,
                     TD, H, W, C, do_pool):
    """Fused InstanceNorm3d(affine=False) + ReLU + embedding add (+ MaxPool3d(2))."""
    h_ref = out_refs[0]
    x = raw_ref[0].astype(jnp.float32)               # (TD, H, W, C)
    h = (x - m_ref[0, 0]) * r_ref[0, 0]
    h = jnp.maximum(h, 0.0) + e_ref[0, 0]
    h_ref[0] = h.astype(h_ref.dtype)
    if do_pool:
        p_ref = out_refs[1]
        hh = h.reshape(TD // 2, 2, H, W, C)
        p = jnp.maximum(hh[:, 0], hh[:, 1])                      # (TD/2,H,W,C)
        pp = p.reshape(TD // 2, H // 2, 2, W, C)
        p = jnp.maximum(pp[:, :, 0], pp[:, :, 1])                # (TD/2,H/2,W,C)
        pw = p.reshape(TD // 2, H // 2, W // 2, 2, C)
        p = jnp.maximum(pw[:, :, :, 0], pw[:, :, :, 1])          # (TD/2,H/2,W/2,C)
        p_ref[0] = p.astype(p_ref.dtype)


def _attn_gate_kernel(x_ref, g_ref, tw_ref, tb_ref, pw_ref, pb_ref, e_ref,
                      qw_ref, qb_ref, y_ref, m_ref, *, TD, H, W, Cx, Cg, Ic):
    """Fused attention gate: mask = sigmoid(psi(relu(theta(x)+phi(g)+embed)))."""
    rows = TD * H * W
    x = x_ref[0].reshape(rows, Cx)                   # bf16
    g = g_ref[0].reshape(rows, Cg)                   # bf16
    t = jnp.dot(x, tw_ref[...], preferred_element_type=jnp.float32) + tb_ref[0]
    ph = jnp.dot(g, pw_ref[...], preferred_element_type=jnp.float32) + pb_ref[0]
    f = jnp.maximum(t + ph + e_ref[0, 0], 0.0)       # (rows, Ic) f32
    # psi (Ic -> 1) as a VPU multiply + lane reduce: avoids a width-1 MXU matmul.
    a = jnp.sum(f * qw_ref[0], axis=-1, keepdims=True) + qb_ref[0]
    a = jax.nn.sigmoid(a)                            # (rows, 1)
    y = x.astype(jnp.float32) * a
    y_ref[0] = y.reshape(TD, H, W, Cx).astype(y_ref.dtype)
    m_ref[0] = a.reshape(TD, H, W)


def _conv1x1_kernel(x_ref, w_ref, b_ref, o_ref, *, TD, H, W, Cin, Cout, act):
    rows = TD * H * W
    x = x_ref[0].reshape(rows, Cin)
    a = jnp.dot(x, w_ref[...], preferred_element_type=jnp.float32) + b_ref[0]
    if act == "sigmoid":
        a = jax.nn.sigmoid(a)
    elif act == "relu":
        a = jnp.maximum(a, 0.0)
    o_ref[0] = a.reshape(TD, H, W, Cout).astype(o_ref.dtype)


def _linear_kernel(x_ref, w_ref, b_ref, o_ref):
    o_ref[...] = (jnp.dot(x_ref[...], w_ref[...],
                          preferred_element_type=jnp.float32) + b_ref[...])


# ----------------------------------------------------------------------------
# Pallas wrappers
# ----------------------------------------------------------------------------
def conv3x3_raw(x, w):
    """x: (N, D, H, W, Cin) bf16; w: (3, 9*Cin, Cout) bf16.
    Returns raw conv output (N,D,H,W,Cout) bf16 (no bias; cancelled by IN) and
    per-slab partial stats (N, nD, 2, Cout) f32."""
    N, D, H, W, Cin = x.shape
    Cout = w.shape[-1]
    TD, nD = _dtile(D)
    xp = jnp.pad(x, ((0, 0), (1, 1), (1, 1), (1, 1), (0, 0)))
    kern = functools.partial(_conv3x3_kernel, TD=TD, H=H, W=W, Cin=Cin,
                             Cout=Cout)
    return pl.pallas_call(
        kern,
        out_shape=(jax.ShapeDtypeStruct((N, D, H, W, Cout), jnp.bfloat16),
                   jax.ShapeDtypeStruct((N, nD, 2, Cout), jnp.float32)),
        grid=(N, nD),
        in_specs=[pl.BlockSpec(memory_space=pl.ANY),
                  pl.BlockSpec((3, 9 * Cin, Cout), lambda n, d: (0, 0, 0))],
        out_specs=(pl.BlockSpec((1, TD, H, W, Cout),
                                lambda n, d: (n, d, 0, 0, 0)),
                   pl.BlockSpec((1, 1, 2, Cout), lambda n, d: (n, d, 0, 0))),
        scratch_shapes=[pltpu.VMEM((TD + 2, H + 2, W + 2, Cin), jnp.bfloat16),
                        pltpu.SemaphoreType.DMA((1,))],
        compiler_params=_params(2),
    )(xp, w)


def instnorm_relu_embed(raw, stats, embed=None, *, do_pool=False):
    """Global-per-(sample,channel) InstanceNorm + ReLU (+ embed add) (+ pool)."""
    N, D, H, W, C = raw.shape
    nD = stats.shape[1]
    TD = D // nD
    cnt = float(D * H * W)
    s = jnp.sum(stats, axis=1)                        # (N, 2, C) f32
    mean = s[:, 0] / cnt
    var = jnp.maximum(s[:, 1] / cnt - mean * mean, 0.0)
    rstd = jax.lax.rsqrt(var + 1e-5)
    if embed is None:
        embed = jnp.zeros((N, C), jnp.float32)
    kern = functools.partial(_norm_act_kernel, TD=TD, H=H, W=W, C=C,
                             do_pool=do_pool)
    in_specs = [pl.BlockSpec((1, TD, H, W, C), lambda n, d: (n, d, 0, 0, 0)),
                pl.BlockSpec((1, 1, C), lambda n, d: (n, 0, 0)),
                pl.BlockSpec((1, 1, C), lambda n, d: (n, 0, 0)),
                pl.BlockSpec((1, 1, C), lambda n, d: (n, 0, 0))]
    h_shape = jax.ShapeDtypeStruct((N, D, H, W, C), jnp.bfloat16)
    h_spec = pl.BlockSpec((1, TD, H, W, C), lambda n, d: (n, d, 0, 0, 0))
    args = (raw, mean.reshape(N, 1, C), rstd.reshape(N, 1, C),
            embed.astype(jnp.float32).reshape(N, 1, C))
    if do_pool:
        # TODO(synk): PyTorch MaxPool3d(2) floors odd spatial dims (186 -> 93);
        # this fused pool assumes even dims (true for the demo sizes).
        assert TD % 2 == 0 and H % 2 == 0 and W % 2 == 0
        p_shape = jax.ShapeDtypeStruct((N, D // 2, H // 2, W // 2, C),
                                       jnp.bfloat16)
        p_spec = pl.BlockSpec((1, TD // 2, H // 2, W // 2, C),
                              lambda n, d: (n, d, 0, 0, 0))
        h, pooled = pl.pallas_call(
            kern, out_shape=(h_shape, p_shape), grid=(N, nD),
            in_specs=in_specs, out_specs=(h_spec, p_spec),
            compiler_params=_params(2))(*args)
        return pooled, h
    return pl.pallas_call(
        kern, out_shape=h_shape, grid=(N, nD),
        in_specs=in_specs, out_specs=h_spec,
        compiler_params=_params(2))(*args)


def conv1x1(x, w, b, *, act="none", out_dtype=jnp.float32):
    N, D, H, W, Cin = x.shape
    Cout = w.shape[1]
    TD, nD = _dtile(D)
    kern = functools.partial(_conv1x1_kernel, TD=TD, H=H, W=W, Cin=Cin,
                             Cout=Cout, act=act)
    return pl.pallas_call(
        kern,
        out_shape=jax.ShapeDtypeStruct((N, D, H, W, Cout), out_dtype),
        grid=(N, nD),
        in_specs=[pl.BlockSpec((1, TD, H, W, Cin), lambda n, d: (n, d, 0, 0, 0)),
                  pl.BlockSpec((Cin, Cout), lambda n, d: (0, 0)),
                  pl.BlockSpec((1, Cout), lambda n, d: (0, 0))],
        out_specs=pl.BlockSpec((1, TD, H, W, Cout), lambda n, d: (n, d, 0, 0, 0)),
        compiler_params=_params(2),
    )(x, w, b.reshape(1, Cout))


def linear(x, w, b):
    N, Din = x.shape
    Dout = w.shape[1]
    return pl.pallas_call(
        _linear_kernel,
        out_shape=jax.ShapeDtypeStruct((N, Dout), jnp.float32),
        grid=(1,),
        in_specs=[pl.BlockSpec((N, Din), lambda i: (0, 0)),
                  pl.BlockSpec((Din, Dout), lambda i: (0, 0)),
                  pl.BlockSpec((1, Dout), lambda i: (0, 0))],
        out_specs=pl.BlockSpec((N, Dout), lambda i: (0, 0)),
        compiler_params=_params(1),
    )(x.astype(jnp.float32), w, b.reshape(1, Dout))


# ----------------------------------------------------------------------------
# Helper modules (plain-JAX glue around the Pallas kernels)
# ----------------------------------------------------------------------------
def pad3d(x, target):
    """Symmetrically pad (or crop) NDHWC spatial dims to a target spatial size."""
    tgt = target.shape[1:4] if hasattr(target, "shape") else tuple(target)
    out = x
    for ax in range(3):
        d = int(tgt[ax]) - out.shape[1 + ax]
        if d > 0:
            pads = [(0, 0)] * 5
            pads[1 + ax] = (d // 2, d - d // 2)
            out = jnp.pad(out, pads)
        elif d < 0:
            start = (-d) // 2
            out = jax.lax.slice_in_dim(out, start, start + int(tgt[ax]),
                                       axis=1 + ax)
    return out


def upsample2(x, mode):
    N, D, H, W, C = x.shape
    # TODO(synk): jax.image.resize('trilinear') may not bit-match
    # torch.nn.Upsample align_corners semantics.
    return jax.image.resize(x, (N, 2 * D, 2 * H, 2 * W, C), method=mode)


def block2_apply(p, x, embds, *, mode):
    # TODO(synk): Block2 was not provided in the excerpt; reconstructed as
    #   Conv3d(3^3) -> InstanceNorm3d -> ReLU, + Linear(embd) per channel,
    #   Conv3d(3^3) -> InstanceNorm3d -> ReLU, then MaxPool3d(2) (encoder) /
    #   trilinear Upsample x2 (decoder, hid_c given) / nothing (final layer).
    e = linear(embds, p["embed"]["w"], p["embed"]["b"])     # (N, h) f32
    raw, st = conv3x3_raw(x, p["conv1"]["w"])
    h = instnorm_relu_embed(raw, st, embed=e)               # relu(IN(conv1)) + e
    raw, st = conv3x3_raw(h, p["conv2"]["w"])
    if p["kind"] == "encoder":
        return instnorm_relu_embed(raw, st, do_pool=True)   # (pooled, pre-pool)
    h = instnorm_relu_embed(raw, st)
    if p["kind"] == "decoder":
        return upsample2(h, mode)
    return h  # final layer


def attention_grid2_apply(p, x, g, embds):
    # TODO(synk): attention_grid2 was not provided in the excerpt; reconstructed
    # as sigmoid(psi(relu(theta(x) + phi(g) + Linear(embds)))) gating x.
    g = pad3d(g, x)
    e = linear(embds, p["embed"]["w"], p["embed"]["b"])     # (N, Ic) f32
    N, D, H, W, Cx = x.shape
    Cg = g.shape[-1]
    Ic = p["theta"]["w"].shape[-1]
    TD, nD = _dtile(D)
    kern = functools.partial(_attn_gate_kernel, TD=TD, H=H, W=W,
                             Cx=Cx, Cg=Cg, Ic=Ic)
    y, m = pl.pallas_call(
        kern,
        out_shape=(jax.ShapeDtypeStruct((N, D, H, W, Cx), jnp.bfloat16),
                   jax.ShapeDtypeStruct((N, D, H, W), jnp.float32)),
        grid=(N, nD),
        in_specs=[
            pl.BlockSpec((1, TD, H, W, Cx), lambda n, d: (n, d, 0, 0, 0)),
            pl.BlockSpec((1, TD, H, W, Cg), lambda n, d: (n, d, 0, 0, 0)),
            pl.BlockSpec((Cx, Ic), lambda n, d: (0, 0)),
            pl.BlockSpec((1, Ic), lambda n, d: (0, 0)),
            pl.BlockSpec((Cg, Ic), lambda n, d: (0, 0)),
            pl.BlockSpec((1, Ic), lambda n, d: (0, 0)),
            pl.BlockSpec((1, 1, Ic), lambda n, d: (n, 0, 0)),
            pl.BlockSpec((1, Ic), lambda n, d: (0, 0)),
            pl.BlockSpec((1, 1), lambda n, d: (0, 0)),
        ],
        out_specs=(pl.BlockSpec((1, TD, H, W, Cx), lambda n, d: (n, d, 0, 0, 0)),
                   pl.BlockSpec((1, TD, H, W), lambda n, d: (n, d, 0, 0))),
        compiler_params=_params(2),
    )(x, g, p["theta"]["w"], p["theta"]["b"].reshape(1, Ic),
      p["phi"]["w"], p["phi"]["b"].reshape(1, Ic), e.reshape(N, 1, Ic),
      p["psi"]["w"].reshape(1, Ic), p["psi"]["b"].reshape(1, 1))
    return y, m


# ----------------------------------------------------------------------------
# Parameter init (deterministic, synthetic)
# ----------------------------------------------------------------------------
def init_conv3(key, cin, cout):
    kw, kb = jax.random.split(key)
    fan_in = 27 * cin
    # Packed layout (3, 9*cin, cout): group kd, rows ordered (kh, kw, cin),
    # matching the im2col built inside _conv3x3_kernel.
    w = (jax.random.normal(kw, (3, 9 * cin, cout), jnp.float32)
         / jnp.sqrt(float(fan_in)))
    return {"w": w.astype(jnp.bfloat16),
            # Bias kept for parity with nn.Conv3d but never applied: it is
            # algebraically cancelled by InstanceNorm's mean subtraction.
            "b": 0.01 * jax.random.normal(kb, (cout,), jnp.float32)}


def init_conv1(key, cin, cout):
    kw, kb = jax.random.split(key)
    w = jax.random.normal(kw, (cin, cout), jnp.float32) / jnp.sqrt(float(cin))
    return {"w": w.astype(jnp.bfloat16),
            "b": 0.01 * jax.random.normal(kb, (cout,), jnp.float32)}


def init_linear(key, din, dout):
    kw, kb = jax.random.split(key)
    return {"w": jax.random.normal(kw, (din, dout), jnp.float32)
                 / jnp.sqrt(float(din)),
            "b": 0.01 * jax.random.normal(kb, (dout,), jnp.float32)}


def init_block2(key, in_c, embd_dim, out_c, hid_c=None, final_layer=False):
    k1, k2, k3 = jax.random.split(key, 3)
    h = hid_c if hid_c is not None else out_c
    kind = "final" if final_layer else ("decoder" if hid_c is not None
                                        else "encoder")
    return {"conv1": init_conv3(k1, in_c, h),
            "embed": init_linear(k2, embd_dim, h),
            "conv2": init_conv3(k3, h, out_c),
            "kind": kind}


def init_attention_grid2(key, x_c, g_c, i_c, embd_dim):
    k1, k2, k3, k4, k5 = jax.random.split(key, 5)
    return {"theta": init_conv1(k1, x_c, i_c),
            "phi": init_conv1(k2, g_c, i_c),
            "psi": {"w": jax.random.normal(k3, (i_c,), jnp.float32)
                         / jnp.sqrt(float(i_c)),
                    "b": 0.01 * jax.random.normal(k4, (1,), jnp.float32)},
            "embed": init_linear(k5, embd_dim, i_c)}


def init_taunet(key, in_c, out_c, embd_dim, n=1):
    n = int(64 / n)  # "Model size factor"
    ks = jax.random.split(key, 14)
    return {
        "layer1": init_block2(ks[0], in_c, embd_dim, 1 * n),
        "layer2": init_block2(ks[1], 1 * n, embd_dim, 2 * n),
        "layer3": init_block2(ks[2], 2 * n, embd_dim, 4 * n),
        "layer4": init_block2(ks[3], 4 * n, embd_dim, 8 * n),
        "layer5": init_block2(ks[4], 8 * n, embd_dim, 8 * n, hid_c=16 * n),
        "layer6": init_block2(ks[5], 16 * n, embd_dim, 4 * n, hid_c=8 * n),
        "layer7": init_block2(ks[6], 8 * n, embd_dim, 2 * n, hid_c=4 * n),
        "layer8": init_block2(ks[7], 4 * n, embd_dim, 1 * n, hid_c=2 * n),
        "layer9": init_block2(ks[8], 2 * n, embd_dim, 1 * n, final_layer=True),
        "out": init_conv1(ks[9], 1 * n, out_c),
        "skip1": init_attention_grid2(ks[10], 1 * n, 1 * n, 1 * n, embd_dim),
        "skip2": init_attention_grid2(ks[11], 2 * n, 2 * n, 2 * n, embd_dim),
        "skip3": init_attention_grid2(ks[12], 4 * n, 4 * n, 4 * n, embd_dim),
        "skip4": init_attention_grid2(ks[13], 8 * n, 8 * n, 8 * n, embd_dim),
    }


# ----------------------------------------------------------------------------
# TAUnet forward
# ----------------------------------------------------------------------------
def taunet_forward(params, x, embds, *, mode="trilinear",
                   pad_target=(16, 16, 16)):
    """x: (N, C, D, H, W) float32 (PyTorch NCDHW), embds: (N, m) float32."""
    assert x.ndim == 5 and embds.ndim == 2 and x.shape[0] == embds.shape[0]
    x = jnp.transpose(x, (0, 2, 3, 4, 1)).astype(jnp.bfloat16)  # -> NDHWC
    embds = embds.astype(jnp.float32)
    x_ = pad3d(x, pad_target)  # original: pad3d(x, (186, 186, 186))

    y, y1 = block2_apply(params["layer1"], x_, embds, mode=mode)
    y, y2 = block2_apply(params["layer2"], y, embds, mode=mode)
    y, y3 = block2_apply(params["layer3"], y, embds, mode=mode)
    y, y4 = block2_apply(params["layer4"], y, embds, mode=mode)
    y = block2_apply(params["layer5"], y, embds, mode=mode)

    y4, _ = attention_grid2_apply(params["skip4"], y4, y, embds)
    y = jnp.concatenate([y4, pad3d(y, y4)], axis=-1)
    y = block2_apply(params["layer6"], y, embds, mode=mode)

    y3, _ = attention_grid2_apply(params["skip3"], y3, y, embds)
    y = jnp.concatenate([y3, pad3d(y, y3)], axis=-1)
    y = block2_apply(params["layer7"], y, embds, mode=mode)

    y2, _ = attention_grid2_apply(params["skip2"], y2, y, embds)
    y = jnp.concatenate([y2, pad3d(y, y2)], axis=-1)
    y = block2_apply(params["layer8"], y, embds, mode=mode)

    y1, attention_mask = attention_grid2_apply(params["skip1"], y1, y, embds)
    del attention_mask  # stored as self.attention_mask in the PyTorch module
    y = jnp.concatenate([y1, pad3d(y, y1)], axis=-1)
    y = block2_apply(params["layer9"], y, embds, mode=mode)

    y = conv1x1(y, params["out"]["w"], params["out"]["b"],
                act="sigmoid", out_dtype=jnp.float32)
    return jnp.transpose(y, (0, 4, 1, 2, 3))  # back to NCDHW


# ----------------------------------------------------------------------------
if __name__ == "__main__":
    key = jax.random.PRNGKey(0)
    kp, kx, ke = jax.random.split(key, 3)

    # Small config: n=8 -> base channels int(64/8)=8 (channel ladder 8/16/32/64).
    in_c, out_c, embd_dim, n_factor = 2, 2, 8, 8
    N, S = 2, 12  # input spatial 12^3, padded to 16^3 (stand-in for 186^3)

    params = init_taunet(kp, in_c, out_c, embd_dim, n=n_factor)
    x = jax.random.normal(kx, (N, in_c, S, S, S), jnp.float32)
    embds = jax.random.normal(ke, (N, embd_dim), jnp.float32)

    y = taunet_forward(params, x, embds, mode="trilinear",
                       pad_target=(16, 16, 16))
    y = jax.block_until_ready(y)

    assert y.shape == (N, out_c, 16, 16, 16), y.shape
    assert bool(jnp.all(jnp.isfinite(y)))
    assert bool(jnp.all((y >= 0.0) & (y <= 1.0)))  # sigmoid output
    print("KERNEL_OK")
</pallas_src>

<mosaic_0001>
module attributes {stable_mosaic.version = 11 : i64} {
  func.func @_linear_kernel(%arg0: i32, %arg1: memref<2x8xf32, #tpu.memory_space<vmem>>, %arg2: memref<8x8xf32, #tpu.memory_space<vmem>>, %arg3: memref<1x8xf32, #tpu.memory_space<vmem>>, %arg4: memref<2x8xf32, #tpu.memory_space<vmem>>) attributes {dimension_semantics = [#tpu.dimension_semantics<parallel>], iteration_bounds = array<i64: 1>, scalar_prefetch = 0 : i64, scratch_operands = 0 : i64, tpu.core_type = #tpu.core_type<tc>, window_params = [{pipeline_mode = #tpu.pipeline_mode<synchronous>, transform_indices = @transform_0, window_bounds = array<i64: 2, 8>}, {pipeline_mode = #tpu.pipeline_mode<synchronous>, transform_indices = @transform_1, window_bounds = array<i64: 8, 8>}, {pipeline_mode = #tpu.pipeline_mode<synchronous>, transform_indices = @transform_2, window_bounds = array<i64: 1, 8>}, {pipeline_mode = #tpu.pipeline_mode<synchronous>, transform_indices = @transform_3, window_bounds = array<i64: 2, 8>}]} {
    %c0 = arith.constant 0 : index
    %c0_0 = arith.constant 0 : index
    %0 = vector.load %arg1[%c0, %c0_0] : memref<2x8xf32, #tpu.memory_space<vmem>>, vector<2x8xf32>
    %c0_1 = arith.constant 0 : index
    %c0_2 = arith.constant 0 : index
    %1 = vector.load %arg2[%c0_1, %c0_2] : memref<8x8xf32, #tpu.memory_space<vmem>>, vector<8x8xf32>
    %cst = arith.constant dense<0.000000e+00> : vector<2x8xf32>
    %2 = tpu.matmul %0, %1, %cst {dimension_numbers = #tpu.dot_dimension_numbers<[1], [0], [0], [1], [0, 0, 1, 1], [], []>} : vector<2x8xf32>, vector<8x8xf32>, vector<2x8xf32> -> vector<2x8xf32>
    %c0_3 = arith.constant 0 : index
    %c0_4 = arith.constant 0 : index
    %3 = vector.load %arg3[%c0_3, %c0_4] : memref<1x8xf32, #tpu.memory_space<vmem>>, vector<1x8xf32>
    %4 = vector.broadcast %3 : vector<1x8xf32> to vector<2x8xf32>
    %5 = arith.addf %2, %4 : vector<2x8xf32>
    %c0_5 = arith.constant 0 : index
    %c0_6 = arith.constant 0 : index
    %6 = vector.load %arg4[%c0_5, %c0_6] : memref<2x8xf32, #tpu.memory_space<vmem>>, vector<2x8xf32>
    tpu.vector_store %arg4[%c0_5, %c0_6], %5 {strides = array<i32>} : memref<2x8xf32, #tpu.memory_space<vmem>>, vector<2x8xf32>,
    return
  }
  func.func @transform_0(%arg0: i32) -> (i32, i32) {
    %c0_i32 = arith.constant 0 : i32
    %c0_i32_0 = arith.constant 0 : i32
    %c0_i32_1 = arith.constant 0 : i32
    return %c0_i32, %c0_i32_0 : i32, i32
  }
  func.func @transform_1(%arg0: i32) -> (i32, i32) {
    %c0_i32 = arith.constant 0 : i32
    %c0_i32_0 = arith.constant 0 : i32
    %c0_i32_1 = arith.constant 0 : i32
    return %c0_i32, %c0_i32_0 : i32, i32
  }
  func.func @transform_2(%arg0: i32) -> (i32, i32) {
    %c0_i32 = arith.constant 0 : i32
    %c0_i32_0 = arith.constant 0 : i32
    %c0_i32_1 = arith.constant 0 : i32
    return %c0_i32, %c0_i32_0 : i32, i32
  }
  func.func @transform_3(%arg0: i32) -> (i32, i32) {
    %c0_i32 = arith.constant 0 : i32
    %c0_i32_0 = arith.constant 0 : i32
    %c0_i32_1 = arith.constant 0 : i32
    return %c0_i32, %c0_i32_0 : i32, i32
  }
}

</mosaic_0001>

<llo_original>
// kernel: tpu_custom_call.1
$region0: #{tpu_custom_call.1}
  #allocation0 [shape = 'u32[]', space=smem, size = 0x4, offset = 0x4, fixed_abs, tag = 'smem constant byte address 0x4 - core index']
  #allocation1 [shape = 'u32[72,128]{1,0:T(1,128)}', space=vmem, size = 0x9000, scoped, tag = 'internal scratch']
  %s0 = inlined_call_operand.hbm [shape: f32[2,8], index: 0, kind: input, shape index: {}]
  %s1 = inlined_call_operand.hbm [shape: f32[8,8], index: 1, kind: input, shape index: {}]
  %s2 = inlined_call_operand.vmem [shape: f32[1,8], index: 2, kind: input, shape index: {}]
  %s3 = inlined_call_operand.hbm [shape: f32[2,8], index: 3, kind: output, shape index: {}]
  %s4 = sld [smem:[#allocation0]]
  $region30: #{tpu_custom_call.1} parent=0
    _
  %s6 = ssub.s32 1, %s4
  %s7 = scalar_select 0, %s6, %s4
  $region1: #{tpu_custom_call.1} parent=0
    #allocation2 [shape = 'u8[1024]{0}', space=vmem, size = 0x400, scoped, tag = 'input window, operand 0, single buffered']
    #allocation3 [shape = 's32[1]{0}', space=sflag, size = 0x4, scoped, tag = 'scoped memory for tpu_custom_call.1']
    #allocation4 [shape = 's32[1]{0}', space=sflag, size = 0x4, scoped, tag = 'scoped memory for tpu_custom_call.1']
    #allocation5 [shape = 'u8[4096]{0}', space=vmem, size = 0x1000, scoped, tag = 'input window, operand 1, single buffered']
    #allocation6 [shape = 's32[1]{0}', space=sflag, size = 0x4, scoped, tag = 'scoped memory for tpu_custom_call.1']
    #allocation7 [shape = 'u8[1024]{0}', space=vmem, size = 0x400, scoped, tag = 'output window, operand 0, single buffered']
    %8 = vsyncpa [#allocation3], 0
    %9 = vsyncpa [#allocation6], 0
    %10 = vsyncpa [#allocation4], 0
    // Predicated region
    $region2: #{tpu_custom_call.1} parent=1 // pred_check
      _
    $region3: #{tpu_custom_call.1} parent=1 // pred_check_branch
      %12 = sbr.rel (0) target = $region5
    $region4: #{tpu_custom_call.1} parent=1 // pred_region
      %14 = vsyncadd [#allocation3], 0
      %s16 = sshll.u32 %s0, 4
      %s17 = int_to_ptr.hbm [resolvable:$true] %s16
      %s18 = sshll.u32 [#allocation2], 4
      %s19 = int_to_ptr.vmem [resolvable:$true] %s18
      %21 = dma.hbm_to_vmem [thread:$0]  %s17, 32, %s19, [#allocation3]
    $region5: #{tpu_custom_call.1} parent=1 // pred_fallthru
      _
    // Predicated region
    $region6: #{tpu_custom_call.1} parent=1 // pred_check
      _
    $region7: #{tpu_custom_call.1} parent=1 // pred_check_branch
      %23 = sbr.rel (0) target = $region9
    $region8: #{tpu_custom_call.1} parent=1 // pred_region
      %25 = vsyncadd [#allocation6], 0
      %s27 = sshll.u32 %s1, 4
      %s28 = int_to_ptr.hbm [resolvable:$true] %s27
      %s29 = sshll.u32 [#allocation5], 4
      %s30 = int_to_ptr.vmem [resolvable:$true] %s29
      %32 = dma.hbm_to_vmem [thread:$0]  %s28, 128, %s30, [#allocation6]
    $region9: #{tpu_custom_call.1} parent=1 // pred_fallthru
      _
    // Predicated region
    $region10: #{tpu_custom_call.1} parent=1 // pred_check
      _
    $region11: #{tpu_custom_call.1} parent=1 // pred_check_branch
      %34 = sbr.rel (0) target = $region13
    $region12: #{tpu_custom_call.1} parent=1 // pred_region
      _
    $region13: #{tpu_custom_call.1} parent=1 // pred_fallthru
      _
    // Predicated region
    $region14: #{tpu_custom_call.1} parent=1 // pred_check
      _
    $region15: #{tpu_custom_call.1} parent=1 // pred_check_branch
      %36 = sbr.rel (0) target = $region17
    $region16: #{tpu_custom_call.1} parent=1 // pred_region
      %38 = dma.done [#allocation3], 32
    $region17: #{tpu_custom_call.1} parent=1 // pred_fallthru
      _
    // Predicated region
    $region18: #{tpu_custom_call.1} parent=1 // pred_check
      _
    $region19: #{tpu_custom_call.1} parent=1 // pred_check_branch
      %40 = sbr.rel (0) target = $region21
    $region20: #{tpu_custom_call.1} parent=1 // pred_region
      %42 = dma.done [#allocation6], 128
    $region21: #{tpu_custom_call.1} parent=1 // pred_fallthru
      _
    %v43 = vld [vmem:[#allocation2] sm:$0x3]
    %v44 = vld [vmem:[#allocation5] sm:$0xff]
    %v45 = vld [vmem:[%s2] sm:$0x1]
    %v47 = vperm.slane %v45, 0
    %vm49 = vcmask 64512
    %v51 = vsel %vm49, %v43, 0
    %53 = vmatpush.msra.mxu0 0.0
    %54 = vmatpush.msra.mxu0 0.0
    %55 = vmatpush.msra.mxu0 0.0
    %56 = vmatpush.msra.mxu0 0.0
    %57 = vmatpush.msra.mxu0 0.0
    %58 = vmatpush.msra.mxu0 0.0
    %59 = vmatpush.msra.mxu0 0.0
    %60 = vmatpush.msra.mxu0 0.0
    %61 = vmatpush.msra.mxu0 0.0
    %62 = vmatpush.msra.mxu0 0.0
    %63 = vmatpush.msra.mxu0 0.0
    %64 = vmatpush.msra.mxu0 0.0
    %65 = vmatpush.msra.mxu0 0.0
    %66 = vmatpush.msra.mxu0 0.0
    %67 = vmatpush.msra.mxu0 0.0
    %68 = vmatpush.msra.mxu0 %v44
    %69 = vmatmul.f32.gmra.mxu0 %v51
    %v70 = vpop.f32.mrf.mxu0
    %v71 = vadd.f32 %v47, %v70
    %72 = vdwg.mxu0
    %vm73 = vcmask 58368
    %74 = vst.msk [vmem:[#allocation7] sm:$0x3] %vm73, %v71
    // Predicated region
    $region22: #{tpu_custom_call.1} parent=1 // pred_check
      _
    $region23: #{tpu_custom_call.1} parent=1 // pred_check_branch
      %76 = sbr.rel (0) target = $region25
    $region24: #{tpu_custom_call.1} parent=1 // pred_region
      %78 = vsyncadd [#allocation4], 0
      %s80 = sshll.u32 [#allocation7], 4
      %s81 = int_to_ptr.vmem [resolvable:$true] %s80
      %s82 = sshll.u32 %s3, 4
      %s83 = int_to_ptr.hbm [resolvable:$true] %s82
      %85 = dma.vmem_to_hbm [thread:$0]  %s81, 32, %s83, [#allocation4]
    $region25: #{tpu_custom_call.1} parent=1 // pred_fallthru
      _
    // Predicated region
    $region26: #{tpu_custom_call.1} parent=1 // pred_check
      _
    $region27: #{tpu_custom_call.1} parent=1 // pred_check_branch
      %87 = sbr.rel (0) target = $region29
    $region28: #{tpu_custom_call.1} parent=1 // pred_region
      %89 = dma.done [#allocation4], 32
    $region29: #{tpu_custom_call.1} parent=1 // pred_fallthru
      _
    %90 = vsyncpa [#allocation3], 1
    %91 = vsyncpa [#allocation6], 1
    %92 = vsyncpa [#allocation4], 1

</llo_original>
